<compile_context>
chip_gen: v7x
topology: tpu7x:2x2x1
jax: 0.10.0
libtpu: 0.0.40
codegen_flags: <defaults>
</compile_context>

<pallas_src>
import jax
import jax.numpy as jnp
from jax.experimental import pallas as pl
from jax.experimental.pallas import tpu as pltpu


def _round_up(x, m):
    return ((x + m - 1) // m) * m


def _masked_variance_kernel(y_ref, alpha_ref, out_ref):
    """One batch tile. y_ref: (K_pad, TB) bf16 (batch on lanes), alpha_ref: (K_pad, 1) f32."""
    Y = y_ref[...].astype(jnp.float32)            # (K_pad, TB)
    alpha = alpha_ref[...]                        # (K_pad, 1), lane-broadcast below

    mask = Y != -1.0
    maskf = mask.astype(jnp.float32)

    p = jnp.where(mask, Y * alpha, 0.0)           # masked product
    n = jnp.sum(maskf, axis=0, keepdims=True)     # (1, TB) valid-label counts
    s = jnp.sum(p, axis=0, keepdims=True)         # (1, TB)
    s2 = jnp.sum(p * p, axis=0, keepdims=True)    # (1, TB)

    inv_n = pl.reciprocal(jnp.where(n > 0.0, n, 1.0), approx=True)
    # One-pass variance: (s2 - s^2/n) / n ; exact for labels in {-1, 0, 1}.
    di = jnp.maximum(s2 - s * s * inv_n, 0.0) * inv_n
    di = jnp.where(n > 0.0, di, 0.0)              # rows with no valid labels are skipped

    @pl.when(pl.program_id(0) == 0)
    def _init():
        out_ref[...] = jnp.zeros_like(out_ref)

    out_ref[...] += jnp.sum(di, axis=1, keepdims=True)


def label_model_theta_forward(Y, theta, M=5.0, lamda1=1e-4, batch_tile=8192):
    """Y: (B, K) labels in {-1, 0, 1} (-1 = missing); theta: (K,). Returns scalar f32."""
    B, K = Y.shape
    theta_f = theta.astype(jnp.float32)

    # Hoisted out of the per-tile body: per-key weights and the L2 regularizer.
    alpha = 1.0 - jax.nn.sigmoid(theta_f - float(M))          # (K,)

    # Sublane-pad K; lane-pad / tile B (tile is a multiple of 128).
    K_pad = _round_up(max(K, 8), 8)
    TB = _round_up(min(batch_tile, _round_up(B, 128)), 128)
    B_pad = _round_up(B, TB)
    num_tiles = B_pad // TB

    # Transposed + bf16; padding is -1 (fully masked) so it contributes nothing.
    # TODO(synk): bf16 is exact for {-1,0,1}; keep f32 if Y may hold arbitrary floats.
    Yt = jnp.transpose(Y.astype(jnp.bfloat16))                # (K, B)
    Yt = jnp.pad(Yt, ((0, K_pad - K), (0, B_pad - B)), constant_values=-1.0)
    alpha_col = jnp.pad(alpha, (0, K_pad - K)).reshape(K_pad, 1)

    obj1 = pl.pallas_call(
        _masked_variance_kernel,
        out_shape=jax.ShapeDtypeStruct((1, 1), jnp.float32),
        grid=(num_tiles,),
        in_specs=[
            pl.BlockSpec((K_pad, TB), lambda i: (0, i)),
            pl.BlockSpec((K_pad, 1), lambda i: (0, 0)),
        ],
        out_specs=pl.BlockSpec((1, 1), lambda i: (0, 0)),
        compiler_params=pltpu.CompilerParams(
            # Output accumulator is resident across the batch-tile axis.
            # TODO(synk): on v7x, emit per-tile partials with ("parallel",) and
            # reduce in the wrapper to use both TensorCores.
            dimension_semantics=("arbitrary",),
            vmem_limit_bytes=32 * 1024 * 1024,
        ),
    )(Yt, alpha_col)[0, 0]

    return obj1 + float(lamda1) * jnp.sum(theta_f * theta_f)


def _reference(Y, theta, M=5.0, lamda1=1e-4):
    """Pure-JAX reference matching the PyTorch loop semantics (two-pass variance)."""
    Y = Y.astype(jnp.float32)
    theta = theta.astype(jnp.float32)
    alpha = 1.0 - jax.nn.sigmoid(theta - M)
    mask = Y != -1.0
    maskf = mask.astype(jnp.float32)
    n = jnp.sum(maskf, axis=1)
    safe_n = jnp.where(n > 0, n, 1.0)
    p = jnp.where(mask, Y * alpha, 0.0)
    mu = jnp.sum(p, axis=1) / safe_n
    d = jnp.where(mask, p - mu[:, None], 0.0)
    di = jnp.sum(d * d, axis=1) / safe_n
    di = jnp.where(n > 0, di, 0.0)
    return jnp.sum(di) + lamda1 * jnp.sum(theta * theta)


if __name__ == "__main__":
    key = jax.random.PRNGKey(0)
    M = 5.0
    lamda1 = 1e-4

    kY, kT, kY2, kT2 = jax.random.split(key, 4)

    # --- small case consistent with the module: batch=4, number_keys=8 -----
    B, K = 4, 8
    Y = jax.random.randint(kY, (B, K), minval=-1, maxval=2).astype(jnp.float32)
    Y = Y.at[2, :].set(-1.0)   # one row entirely missing -> skipped by the mask
    theta = 0.1 * jax.random.normal(kT, (K,), dtype=jnp.float32)

    out = jax.block_until_ready(
        label_model_theta_forward(Y, theta, M=M, lamda1=lamda1))
    ref = _reference(Y, theta, M=M, lamda1=lamda1)
    # Loose-ish tolerance: kernel uses the EUP approximate reciprocal.
    assert jnp.allclose(out, ref, rtol=5e-3, atol=1e-4), (out, ref)

    # --- multi-tile case: exercises grid accumulation + K/B padding --------
    B2, K2 = 300, 11
    Y2 = jax.random.randint(kY2, (B2, K2), minval=-1, maxval=2).astype(jnp.float32)
    Y2 = Y2.at[7, :].set(-1.0)
    theta2 = 0.1 * jax.random.normal(kT2, (K2,), dtype=jnp.float32)

    out2 = jax.block_until_ready(
        label_model_theta_forward(Y2, theta2, M=M, lamda1=lamda1, batch_tile=128))
    ref2 = _reference(Y2, theta2, M=M, lamda1=lamda1)
    assert jnp.allclose(out2, ref2, rtol=5e-3, atol=1e-3), (out2, ref2)

    print("KERNEL_OK")
</pallas_src>

<mosaic_0001>
module attributes {stable_mosaic.version = 11 : i64} {
  func.func @_masked_variance_kernel(%arg0: i32, %arg1: memref<8x128xbf16, #tpu.memory_space<vmem>>, %arg2: memref<8x1xf32, #tpu.memory_space<vmem>>, %arg3: memref<1x1xf32, #tpu.memory_space<vmem>>) attributes {dimension_semantics = [#tpu.dimension_semantics<arbitrary>], iteration_bounds = array<i64: 1>, scalar_prefetch = 0 : i64, scratch_operands = 0 : i64, tpu.core_type = #tpu.core_type<tc>, window_params = [{transform_indices = @transform_0, window_bounds = array<i64: 8, 128>}, {pipeline_mode = #tpu.pipeline_mode<synchronous>, transform_indices = @transform_1, window_bounds = array<i64: 8, 1>}, {pipeline_mode = #tpu.pipeline_mode<synchronous>, transform_indices = @transform_2, window_bounds = array<i64: 1, 1>}]} {
    %c0 = arith.constant 0 : index
    %c0_0 = arith.constant 0 : index
    %0 = vector.load %arg1[%c0, %c0_0] : memref<8x128xbf16, #tpu.memory_space<vmem>>, vector<8x128xbf16>
    %1 = arith.extf %0 : vector<8x128xbf16> to vector<8x128xf32>
    %c0_1 = arith.constant 0 : index
    %c0_2 = arith.constant 0 : index
    %2 = vector.load %arg2[%c0_1, %c0_2] : memref<8x1xf32, #tpu.memory_space<vmem>>, vector<8x1xf32>
    %cst = arith.constant -1.000000e+00 : f32
    %3 = vector.broadcast %cst : f32 to vector<8x128xf32>
    %4 = arith.cmpf one, %1, %3 : vector<8x128xf32>
    %5 = arith.extui %4 : vector<8x128xi1> to vector<8x128xi32>
    %6 = arith.sitofp %5 : vector<8x128xi32> to vector<8x128xf32>
    %7 = vector.broadcast %2 : vector<8x1xf32> to vector<8x128xf32>
    %8 = arith.mulf %1, %7 : vector<8x128xf32>
    %cst_3 = arith.constant 0.000000e+00 : f32
    %9 = vector.broadcast %cst_3 : f32 to vector<8x128xf32>
    %10 = arith.select %4, %8, %9 : vector<8x128xi1>, vector<8x128xf32>
    %cst_4 = arith.constant dense<0.000000e+00> : vector<128xf32>
    %11 = vector.multi_reduction <add>, %6, %cst_4 [0] : vector<8x128xf32> to vector<128xf32>
    %12 = vector.shape_cast %11 : vector<128xf32> to vector<1x128xf32>
    %cst_5 = arith.constant dense<0.000000e+00> : vector<128xf32>
    %13 = vector.multi_reduction <add>, %10, %cst_5 [0] : vector<8x128xf32> to vector<128xf32>
    %14 = vector.shape_cast %13 : vector<128xf32> to vector<1x128xf32>
    %15 = arith.mulf %10, %10 : vector<8x128xf32>
    %cst_6 = arith.constant dense<0.000000e+00> : vector<128xf32>
    %16 = vector.multi_reduction <add>, %15, %cst_6 [0] : vector<8x128xf32> to vector<128xf32>
    %17 = vector.shape_cast %16 : vector<128xf32> to vector<1x128xf32>
    %cst_7 = arith.constant 0.000000e+00 : f32
    %18 = vector.broadcast %cst_7 : f32 to vector<1x128xf32>
    %19 = arith.cmpf ogt, %12, %18 : vector<1x128xf32>
    %cst_8 = arith.constant 1.000000e+00 : f32
    %20 = vector.broadcast %cst_8 : f32 to vector<1x128xf32>
    %21 = arith.select %19, %12, %20 : vector<1x128xi1>, vector<1x128xf32>
    %22 = tpu.reciprocal %21 {approx = true} : vector<1x128xf32> -> vector<1x128xf32>
    %23 = arith.mulf %14, %14 : vector<1x128xf32>
    %24 = arith.mulf %23, %22 : vector<1x128xf32>
    %25 = arith.subf %17, %24 : vector<1x128xf32>
    %cst_9 = arith.constant 0.000000e+00 : f32
    %26 = vector.broadcast %cst_9 : f32 to vector<1x128xf32>
    %27 = arith.maximumf %25, %26 : vector<1x128xf32>
    %28 = arith.mulf %27, %22 : vector<1x128xf32>
    %cst_10 = arith.constant 0.000000e+00 : f32
    %29 = vector.broadcast %cst_10 : f32 to vector<1x128xf32>
    %30 = arith.cmpf ogt, %12, %29 : vector<1x128xf32>
    %cst_11 = arith.constant 0.000000e+00 : f32
    %31 = vector.broadcast %cst_11 : f32 to vector<1x128xf32>
    %32 = arith.select %30, %28, %31 : vector<1x128xi1>, vector<1x128xf32>
    %c0_i32 = arith.constant 0 : i32
    %33 = arith.cmpi eq, %arg0, %c0_i32 : i32
    %34 = arith.extui %33 : i1 to i32
    %c0_i32_12 = arith.constant 0 : i32
    %35 = arith.cmpi ne, %34, %c0_i32_12 : i32
    scf.if %35 {
      %cst_18 = arith.constant 0.000000e+00 : f32
      %41 = vector.broadcast %cst_18 : f32 to vector<1x1xf32>
      %c0_19 = arith.constant 0 : index
      %c0_20 = arith.constant 0 : index
      %42 = vector.load %arg3[%c0_19, %c0_20] : memref<1x1xf32, #tpu.memory_space<vmem>>, vector<1x1xf32>
      tpu.vector_store %arg3[%c0_19, %c0_20], %41 {strides = array<i32>} : memref<1x1xf32, #tpu.memory_space<vmem>>, vector<1x1xf32>,
    } else {
    }
    %c0_13 = arith.constant 0 : index
    %c0_14 = arith.constant 0 : index
    %36 = vector.load %arg3[%c0_13, %c0_14] : memref<1x1xf32, #tpu.memory_space<vmem>>, vector<1x1xf32>
    %cst_15 = arith.constant dense<0.000000e+00> : vector<1xf32>
    %37 = vector.multi_reduction <add>, %32, %cst_15 [1] : vector<1x128xf32> to vector<1xf32>
    %38 = vector.shape_cast %37 : vector<1xf32> to vector<1x1xf32>
    %39 = arith.addf %36, %38 : vector<1x1xf32>
    %c0_16 = arith.constant 0 : index
    %c0_17 = arith.constant 0 : index
    %40 = vector.load %arg3[%c0_16, %c0_17] : memref<1x1xf32, #tpu.memory_space<vmem>>, vector<1x1xf32>
    tpu.vector_store %arg3[%c0_16, %c0_17], %39 {strides = array<i32>} : memref<1x1xf32, #tpu.memory_space<vmem>>, vector<1x1xf32>,
    return
  }
  func.func @transform_0(%arg0: i32) -> (i32, i32) {
    %c0_i32 = arith.constant 0 : i32
    %c0_i32_0 = arith.constant 0 : i32
    return %c0_i32, %arg0 : i32, i32
  }
  func.func @transform_1(%arg0: i32) -> (i32, i32) {
    %c0_i32 = arith.constant 0 : i32
    %c0_i32_0 = arith.constant 0 : i32
    %c0_i32_1 = arith.constant 0 : i32
    return %c0_i32, %c0_i32_0 : i32, i32
  }
  func.func @transform_2(%arg0: i32) -> (i32, i32) {
    %c0_i32 = arith.constant 0 : i32
    %c0_i32_0 = arith.constant 0 : i32
    %c0_i32_1 = arith.constant 0 : i32
    return %c0_i32, %c0_i32_0 : i32, i32
  }
}

</mosaic_0001>

<llo_original>
// kernel: tpu_custom_call.1
$region0: #{tpu_custom_call.1}
  #allocation0 [shape = 'u32[]', space=smem, size = 0x4, offset = 0x4, fixed_abs, tag = 'smem constant byte address 0x4 - core index']
  #allocation1 [shape = 'u32[144,128]{1,0:T(1,128)}', space=vmem, size = 0x12000, scoped, tag = 'internal scratch']
  %s0 = inlined_call_operand.vmem [shape: bf16[8,128], index: 0, kind: input, shape index: {}]
  %s1 = inlined_call_operand.vmem [shape: f32[8,1], index: 1, kind: input, shape index: {}]
  %s2 = inlined_call_operand.hbm [shape: f32[1,1], index: 2, kind: output, shape index: {}]
  %s3 = sld [smem:[#allocation0]]
  $region22: #{tpu_custom_call.1} parent=0
    _
  %s5 = ssub.s32 1, %s3
  %s6 = scalar_select 0, %s5, %s3
  $region1: #{tpu_custom_call.1} parent=0
    #allocation2 [shape = 'u8[512]{0}', space=vmem, size = 0x400, scoped, tag = 'output window, operand 0, single buffered']
    #allocation3 [shape = 's32[1]{0}', space=sflag, size = 0x4, scoped, tag = 'scoped memory for tpu_custom_call.1']
    %7 = vsyncpa [#allocation3], 0
    // Predicated region
    $region2: #{tpu_custom_call.1} parent=1 // pred_check
      _
    $region3: #{tpu_custom_call.1} parent=1 // pred_check_branch
      %9 = sbr.rel (0) target = $region5
    $region4: #{tpu_custom_call.1} parent=1 // pred_region
      _
    $region5: #{tpu_custom_call.1} parent=1 // pred_fallthru
      _
    // Predicated region
    $region6: #{tpu_custom_call.1} parent=1 // pred_check
      _
    $region7: #{tpu_custom_call.1} parent=1 // pred_check_branch
      %11 = sbr.rel (0) target = $region9
    $region8: #{tpu_custom_call.1} parent=1 // pred_region
      _
    $region9: #{tpu_custom_call.1} parent=1 // pred_fallthru
      _
    %v12 = vld [vmem:[%s0] sm:$0xf]
    %v13 = vunpack.c.l.bf16 %v12
    %v14 = vld [vmem:[%s1] sm:$0xff]
    %vm15 = vcmp.ne.f32.partialorder %v13, -1.0
    %v16 = vsel %vm15, 1, 0
    %v17 = vcvt.s32.f32 %v16
    %19 = vset.pattern.permute.xlu0 0
    %20 = vperm.xlu0 %19, %v14
    %v21 = vpop.permute.xlu0 %20
    %v23 = vmul.f32 %v13, %v21
    %v24 = vsel %vm15, %v23, 0.0
    %v25 = vrot.slane %v17, 4
    %v26 = vadd.f32 %v17, %v25
    %v27 = vrot.slane %v26, 2
    %v28 = vadd.f32 %v26, %v27
    %v29 = vrot.slane %v28, 1
    %v30 = vadd.f32 %v28, %v29
    %v31 = vrot.slane %v24, 4
    %v32 = vadd.f32 %v24, %v31
    %v33 = vrot.slane %v32, 2
    %v34 = vadd.f32 %v32, %v33
    %v35 = vrot.slane %v34, 1
    %v36 = vadd.f32 %v34, %v35
    %v37 = vmul.f32 %v24, %v24
    %v38 = vrot.slane %v37, 4
    %v39 = vadd.f32 %v37, %v38
    %v40 = vrot.slane %v39, 2
    %v41 = vadd.f32 %v39, %v40
    %v42 = vrot.slane %v41, 1
    %v43 = vadd.f32 %v41, %v42
    %vm44 = vcmp.gt.f32.partialorder %v30, 0.0
    %v45 = vsel %vm44, %v30, 1.0
    %v46 = vrcp.pop %v45
    %v47 = vmul.f32 %v36, %v36
    %v48 = vmul.f32 %v47, %v46
    %v49 = vsub.f32 %v43, %v48
    %v50 = vmax.f32 %v49, 0.0
    %v51 = vmul.f32 %v50, %v46
    %v52 = vsel %vm44, %v51, 0.0
    %p53 = scmp.eq.s32.totalorder 0, 0
    // Predicated region
    $region10: #{tpu_custom_call.1} parent=1 // pred_check
      %p54 = pneg %p53
    $region11: #{tpu_custom_call.1} parent=1 // pred_check_branch
      %56 = sbr.rel (%p54) target = $region13
    $region12: #{tpu_custom_call.1} parent=1 // pred_region
      %vm57 = vcmask 0
      %58 = vst.msk [vmem:[#allocation2] sm:$0x1] %vm57, 0.0
    $region13: #{tpu_custom_call.1} parent=1 // pred_fallthru
      _
    %v59 = vld [vmem:[#allocation2] sm:$0x1]
    %60 = vadd.xlane.f32.xlu0 %v52
    %v61 = vpop.xlane.xlu0 %60
    %v62 = vadd.f32 %v59, %v61
    %vm63 = vcmask 0
    %64 = vst.msk [vmem:[#allocation2] sm:$0x1] %vm63, %v62
    // Predicated region
    $region14: #{tpu_custom_call.1} parent=1 // pred_check
      _
    $region15: #{tpu_custom_call.1} parent=1 // pred_check_branch
      %66 = sbr.rel (0) target = $region17
    $region16: #{tpu_custom_call.1} parent=1 // pred_region
      %s68 = ssub.s32 16, 16
      %69 = vsyncadd [#allocation3], %s68
      %s71 = sshll.u32 [#allocation2], 4
      %s72 = int_to_ptr.vmem [resolvable:$true] %s71
      %74 = dma.vmem_to_hbm [thread:$0]  %s72, 16, %s2, [#allocation3]
    $region17: #{tpu_custom_call.1} parent=1 // pred_fallthru
      _
    // Predicated region
    $region18: #{tpu_custom_call.1} parent=1 // pred_check
      _
    $region19: #{tpu_custom_call.1} parent=1 // pred_check_branch
      %76 = sbr.rel (0) target = $region21
    $region20: #{tpu_custom_call.1} parent=1 // pred_region
      %77 = dma.done [#allocation3], 16
    $region21: #{tpu_custom_call.1} parent=1 // pred_fallthru
      _
    %78 = vsyncpa [#allocation3], 1

</llo_original>
